<compile_context>
chip_gen: v6e
topology: v6e:2x2x1
jax: 0.10.0
libtpu: 0.0.40
codegen_flags: <defaults>
</compile_context>

<pallas_src>
import jax
import jax.numpy as jnp
from jax.experimental import pallas as pl
from jax.experimental.pallas import tpu as pltpu


def _mlp_kernel(x_ref, wgu_ref, wd_ref, o_ref, acc_ref):
    """One (token-tile i, intermediate-tile k) grid step."""
    k = pl.program_id(1)

    @pl.when(k == 0)
    def _():
        acc_ref[...] = jnp.zeros_like(acc_ref)

    x = x_ref[...]  # keep native dtype (bf16/f32); MXU accumulates in f32.

    # Merged gate|up projection: one DMA stream, one MXU launch per step.
    gu = jnp.dot(x, wgu_ref[...], preferred_element_type=jnp.float32)  # (tm, 2*ti)
    ti = gu.shape[-1] // 2
    gate = gu[:, :ti]
    up = gu[:, ti:]

    # SiluAndMul in f32 (sigmoid's exp lands on the EUP slot), then cast back
    # to the weight dtype so the down matmul runs on the bf16 MXU path.
    act = (gate * jax.nn.sigmoid(gate) * up).astype(wd_ref.dtype)

    acc_ref[...] += jnp.dot(act, wd_ref[...], preferred_element_type=jnp.float32)

    @pl.when(k == pl.num_programs(1) - 1)
    def _():
        o_ref[...] = acc_ref[...].astype(o_ref.dtype)


def _round_up(x, m):
    return pl.cdiv(x, m) * m


def _chip_defaults():
    """(tm, ti, vmem_limit_bytes) derived from the chip's VMEM capacity."""
    try:
        vmem_cap = pltpu.get_tpu_info().vmem_capacity_bytes
    except Exception:
        vmem_cap = 64 * 1024 * 1024  # conservative (v7x-sized) fallback
    if vmem_cap >= 96 * 1024 * 1024:
        # v5e / v6e: 128 MiB physical VMEM. tm=512 keeps the kernel MXU-bound
        # on the weight stream; leave generous scoped-VMEM headroom.
        return 512, 512, 100 * 1024 * 1024
    # v7x: 64 MiB physical per TC; ~52 MiB cap leaves room for Mosaic
    # internal scratch, elementwise f32 temporaries and spills.
    return 384, 512, 52 * 1024 * 1024


def cogvlm_mlp(x, w_gate, w_up, w_down, *, tm=None, ti=None, vmem_limit_bytes=None):
    """x: [..., H]; w_gate, w_up: [H, I]; w_down: [I, H] -> [..., H].

    tm: token tile. Auto-picked per generation (512 on v5e/v6e, 384 on v7x);
        balanced / shrunk for small or awkward token counts.
    ti: intermediate tile (multiple of 128 when it tiles I).
    """
    orig_shape = x.shape
    H = orig_shape[-1]
    x2d = x.reshape(-1, H)
    M = x2d.shape[0]
    I = w_gate.shape[1]
    assert w_up.shape == (H, I) and w_down.shape == (I, H)

    tm_d, ti_d, vmem_d = _chip_defaults()
    tm = tm_d if tm is None else tm
    ti = ti_d if ti is None else ti
    vmem_limit_bytes = vmem_d if vmem_limit_bytes is None else vmem_limit_bytes

    # --- Token tile selection: avoid near-empty last tiles -------------------
    if M <= tm:
        # Single token tile; keep it MXU/lane friendly without over-padding.
        tm = _round_up(M, 8) if M < 128 else _round_up(M, 128)
    else:
        # Balance tiles so the last one isn't mostly padding; keep 128-aligned.
        n_tiles = pl.cdiv(M, tm)
        tm = _round_up(pl.cdiv(M, n_tiles), 128)
    assert tm % 8 == 0

    # --- Intermediate tile selection -----------------------------------------
    ti = min(ti, I)
    if ti < I:
        assert ti % 128 == 0, "intermediate tile must be a multiple of 128"

    Mp = _round_up(M, tm)
    Ip = _round_up(I, ti)

    if Mp != M:
        x2d = jnp.pad(x2d, ((0, Mp - M), (0, 0)))
    if Ip != I:
        # Zero-padded intermediate columns/rows contribute exactly 0.
        w_gate = jnp.pad(w_gate, ((0, 0), (0, Ip - I)))
        w_up = jnp.pad(w_up, ((0, 0), (0, Ip - I)))
        w_down = jnp.pad(w_down, ((0, Ip - I), (0, 0)))

    # Merge gate/up, interleaved per intermediate tile so one (H, 2*ti) block
    # holds the matching gate tile followed by the matching up tile.
    nI = Ip // ti
    w_gu = jnp.concatenate(
        [w_gate.reshape(H, nI, ti), w_up.reshape(H, nI, ti)], axis=2
    ).reshape(H, 2 * Ip)

    grid = (Mp // tm, nI)
    n_token_tiles = Mp // tm

    dt_bytes = jnp.dtype(x.dtype).itemsize
    cost = pl.CostEstimate(
        flops=6 * Mp * H * Ip,                 # gate+up (merged) + down matmuls
        transcendentals=Mp * Ip,               # one exp per gate element
        # Weights re-stream once per token tile; x and out move once.
        bytes_accessed=(2 * Mp * H + 3 * H * Ip * n_token_tiles) * dt_bytes,
    )

    out = pl.pallas_call(
        _mlp_kernel,
        out_shape=jax.ShapeDtypeStruct((Mp, H), x.dtype),
        grid_spec=pltpu.PrefetchScalarGridSpec(
            num_scalar_prefetch=0,
            grid=grid,
            in_specs=[
                pl.BlockSpec((tm, H), lambda i, k: (i, 0)),      # token tile (resident over k)
                pl.BlockSpec((H, 2 * ti), lambda i, k: (0, k)),  # merged gate|up weight tile
                pl.BlockSpec((ti, H), lambda i, k: (k, 0)),      # down weight tile
            ],
            out_specs=pl.BlockSpec((tm, H), lambda i, k: (i, 0)),
            scratch_shapes=[pltpu.VMEM((tm, H), jnp.float32)],
        ),
        compiler_params=pltpu.CompilerParams(
            dimension_semantics=("parallel", "arbitrary"),
            vmem_limit_bytes=vmem_limit_bytes,
        ),
        cost_estimate=cost,
    )(x2d, w_gu, w_down)

    out = out[:M]
    return out.reshape(orig_shape)


def _reference_mlp(x, w_gate, w_up, w_down):
    xf = x.astype(jnp.float32)
    g = xf @ w_gate.astype(jnp.float32)
    u = xf @ w_up.astype(jnp.float32)
    act = jax.nn.silu(g) * u
    return (act @ w_down.astype(jnp.float32)).astype(x.dtype)


if __name__ == "__main__":
    # TODO(synk): tensor-parallel sharding / all-reduce of the torch module is
    # intentionally out of scope (single-device kernel, all_reduce=False path).
    # TODO(synk): v7x decode (single token tile) runs on one TensorCore; an
    # H-split parallel axis for the down projection would engage both TCs.

    # ---- Test 1: small f32 config consistent with the module ----------------
    batch, seq, hidden, inter = 2, 8, 32, 64
    key = jax.random.PRNGKey(0)
    kx, kg, ku, kd = jax.random.split(key, 4)

    x = jax.random.normal(kx, (batch, seq, hidden), dtype=jnp.float32)
    w_gate = jax.random.normal(kg, (hidden, inter), dtype=jnp.float32) * 0.05
    w_up = jax.random.normal(ku, (hidden, inter), dtype=jnp.float32) * 0.05
    w_down = jax.random.normal(kd, (inter, hidden), dtype=jnp.float32) * 0.05

    out = cogvlm_mlp(x, w_gate, w_up, w_down)
    jax.block_until_ready(out)

    ref = _reference_mlp(x.reshape(-1, hidden), w_gate, w_up, w_down).reshape(x.shape)
    assert jnp.allclose(out, ref, atol=1e-4, rtol=1e-4), float(
        jnp.max(jnp.abs(out - ref)))

    # ---- Test 2: bf16, multi-tile grid (exercises k-accumulation + merge) ---
    M2, H2, I2 = 384, 256, 512
    kx2, kg2, ku2, kd2 = jax.random.split(jax.random.PRNGKey(1), 4)
    x2 = jax.random.normal(kx2, (M2, H2), dtype=jnp.float32).astype(jnp.bfloat16)
    wg2 = (jax.random.normal(kg2, (H2, I2), dtype=jnp.float32) * 0.05).astype(jnp.bfloat16)
    wu2 = (jax.random.normal(ku2, (H2, I2), dtype=jnp.float32) * 0.05).astype(jnp.bfloat16)
    wd2 = (jax.random.normal(kd2, (I2, H2), dtype=jnp.float32) * 0.05).astype(jnp.bfloat16)

    out2 = cogvlm_mlp(x2, wg2, wu2, wd2, tm=128, ti=256)
    jax.block_until_ready(out2)
    ref2 = _reference_mlp(x2, wg2, wu2, wd2)
    # bf16 down-matmul input cast => small deviation vs all-f32 reference.
    err = float(jnp.max(jnp.abs(out2.astype(jnp.float32) - ref2.astype(jnp.float32))))
    assert err < 1e-1, err

    # ---- Test 3: decode-shaped (tiny M), default (chip-derived) tiles -------
    M3, H3, I3 = 20, 128, 256
    kx3, kg3, ku3, kd3 = jax.random.split(jax.random.PRNGKey(2), 4)
    x3 = jax.random.normal(kx3, (M3, H3), dtype=jnp.float32).astype(jnp.bfloat16)
    wg3 = (jax.random.normal(kg3, (H3, I3), dtype=jnp.float32) * 0.05).astype(jnp.bfloat16)
    wu3 = (jax.random.normal(ku3, (H3, I3), dtype=jnp.float32) * 0.05).astype(jnp.bfloat16)
    wd3 = (jax.random.normal(kd3, (I3, H3), dtype=jnp.float32) * 0.05).astype(jnp.bfloat16)

    out3 = cogvlm_mlp(x3, wg3, wu3, wd3)
    jax.block_until_ready(out3)
    ref3 = _reference_mlp(x3, wg3, wu3, wd3)
    err3 = float(jnp.max(jnp.abs(out3.astype(jnp.float32) - ref3.astype(jnp.float32))))
    assert err3 < 1e-1, err3

    print("KERNEL_OK")
</pallas_src>

<mosaic_0001>
module attributes {stable_mosaic.version = 11 : i64} {
  func.func @_mlp_kernel(%arg0: i32, %arg1: i32, %arg2: memref<16x32xf32, #tpu.memory_space<vmem>>, %arg3: memref<32x128xf32, #tpu.memory_space<vmem>>, %arg4: memref<64x32xf32, #tpu.memory_space<vmem>>, %arg5: memref<16x32xf32, #tpu.memory_space<vmem>>, %arg6: memref<16x32xf32, #tpu.memory_space<vmem>>) attributes {dimension_semantics = [#tpu.dimension_semantics<parallel>, #tpu.dimension_semantics<arbitrary>], iteration_bounds = array<i64: 1, 1>, scalar_prefetch = 0 : i64, scratch_operands = 1 : i64, tpu.core_type = #tpu.core_type<tc>, window_params = [{transform_indices = @transform_0, window_bounds = array<i64: 16, 32>}, {transform_indices = @transform_1, window_bounds = array<i64: 32, 128>}, {transform_indices = @transform_2, window_bounds = array<i64: 64, 32>}, {transform_indices = @transform_3, window_bounds = array<i64: 16, 32>}]} {
    %c0_i32 = arith.constant 0 : i32
    %0 = arith.cmpi eq, %arg1, %c0_i32 : i32
    %1 = arith.extui %0 : i1 to i32
    %c0_i32_0 = arith.constant 0 : i32
    %2 = arith.cmpi ne, %1, %c0_i32_0 : i32
    scf.if %2 {
      %cst_14 = arith.constant 0.000000e+00 : f32
      %23 = vector.broadcast %cst_14 : f32 to vector<16x32xf32>
      %c0_15 = arith.constant 0 : index
      %c0_16 = arith.constant 0 : index
      %24 = vector.load %arg6[%c0_15, %c0_16] : memref<16x32xf32, #tpu.memory_space<vmem>>, vector<16x32xf32>
      tpu.vector_store %arg6[%c0_15, %c0_16], %23 {strides = array<i32>} : memref<16x32xf32, #tpu.memory_space<vmem>>, vector<16x32xf32>,
    } else {
    }
    %c0 = arith.constant 0 : index
    %c0_1 = arith.constant 0 : index
    %3 = vector.load %arg2[%c0, %c0_1] : memref<16x32xf32, #tpu.memory_space<vmem>>, vector<16x32xf32>
    %c0_2 = arith.constant 0 : index
    %c0_3 = arith.constant 0 : index
    %4 = vector.load %arg3[%c0_2, %c0_3] : memref<32x128xf32, #tpu.memory_space<vmem>>, vector<32x128xf32>
    %cst = arith.constant dense<0.000000e+00> : vector<16x128xf32>
    %5 = tpu.matmul %3, %4, %cst {dimension_numbers = #tpu.dot_dimension_numbers<[1], [0], [0], [1], [0, 0, 1, 1], [], []>} : vector<16x32xf32>, vector<32x128xf32>, vector<16x128xf32> -> vector<16x128xf32>
    %6 = vector.extract_strided_slice %5 {offsets = [0, 0], sizes = [16, 64], strides = [1, 1]} : vector<16x128xf32> to vector<16x64xf32>
    %7 = vector.extract_strided_slice %5 {offsets = [0, 64], sizes = [16, 64], strides = [1, 1]} : vector<16x128xf32> to vector<16x64xf32>
    %8 = arith.negf %6 : vector<16x64xf32>
    %9 = math.exp %8 : vector<16x64xf32>
    %cst_4 = arith.constant 1.000000e+00 : f32
    %10 = vector.broadcast %cst_4 : f32 to vector<16x64xf32>
    %11 = arith.addf %10, %9 : vector<16x64xf32>
    %12 = arith.divf %10, %11 : vector<16x64xf32>
    %13 = arith.mulf %6, %12 : vector<16x64xf32>
    %14 = arith.mulf %13, %7 : vector<16x64xf32>
    %c0_5 = arith.constant 0 : index
    %c0_6 = arith.constant 0 : index
    %15 = vector.load %arg6[%c0_5, %c0_6] : memref<16x32xf32, #tpu.memory_space<vmem>>, vector<16x32xf32>
    %c0_7 = arith.constant 0 : index
    %c0_8 = arith.constant 0 : index
    %16 = vector.load %arg4[%c0_7, %c0_8] : memref<64x32xf32, #tpu.memory_space<vmem>>, vector<64x32xf32>
    %cst_9 = arith.constant dense<0.000000e+00> : vector<16x32xf32>
    %17 = tpu.matmul %14, %16, %cst_9 {dimension_numbers = #tpu.dot_dimension_numbers<[1], [0], [0], [1], [0, 0, 1, 1], [], []>} : vector<16x64xf32>, vector<64x32xf32>, vector<16x32xf32> -> vector<16x32xf32>
    %18 = arith.addf %15, %17 : vector<16x32xf32>
    %c0_10 = arith.constant 0 : index
    %c0_11 = arith.constant 0 : index
    %19 = vector.load %arg6[%c0_10, %c0_11] : memref<16x32xf32, #tpu.memory_space<vmem>>, vector<16x32xf32>
    tpu.vector_store %arg6[%c0_10, %c0_11], %18 {strides = array<i32>} : memref<16x32xf32, #tpu.memory_space<vmem>>, vector<16x32xf32>,
    %c0_i32_12 = arith.constant 0 : i32
    %20 = arith.cmpi eq, %arg1, %c0_i32_12 : i32
    %21 = arith.extui %20 : i1 to i32
    %c0_i32_13 = arith.constant 0 : i32
    %22 = arith.cmpi ne, %21, %c0_i32_13 : i32
    scf.if %22 {
      %c0_14 = arith.constant 0 : index
      %c0_15 = arith.constant 0 : index
      %23 = vector.load %arg6[%c0_14, %c0_15] : memref<16x32xf32, #tpu.memory_space<vmem>>, vector<16x32xf32>
      %c0_16 = arith.constant 0 : index
      %c0_17 = arith.constant 0 : index
      %24 = vector.load %arg5[%c0_16, %c0_17] : memref<16x32xf32, #tpu.memory_space<vmem>>, vector<16x32xf32>
      tpu.vector_store %arg5[%c0_16, %c0_17], %23 {strides = array<i32>} : memref<16x32xf32, #tpu.memory_space<vmem>>, vector<16x32xf32>,
    } else {
    }
    return
  }
  func.func @transform_0(%arg0: i32, %arg1: i32) -> (i32, i32) {
    %c0_i32 = arith.constant 0 : i32
    %c0_i32_0 = arith.constant 0 : i32
    return %arg0, %c0_i32 : i32, i32
  }
  func.func @transform_1(%arg0: i32, %arg1: i32) -> (i32, i32) {
    %c0_i32 = arith.constant 0 : i32
    %c0_i32_0 = arith.constant 0 : i32
    return %c0_i32, %arg1 : i32, i32
  }
  func.func @transform_2(%arg0: i32, %arg1: i32) -> (i32, i32) {
    %c0_i32 = arith.constant 0 : i32
    %c0_i32_0 = arith.constant 0 : i32
    return %arg1, %c0_i32 : i32, i32
  }
  func.func @transform_3(%arg0: i32, %arg1: i32) -> (i32, i32) {
    %c0_i32 = arith.constant 0 : i32
    %c0_i32_0 = arith.constant 0 : i32
    return %arg0, %c0_i32 : i32, i32
  }
}

</mosaic_0001>

<llo_original>
// kernel: tpu_custom_call.1
$region0: #{tpu_custom_call.1}
  #allocation0 [shape = 'u32[]', space=smem, size = 0x4, offset = 0x4, fixed_abs, tag = 'smem constant byte address 0x4 - core index']
  #allocation1 [shape = 'u32[144,128]{1,0:T(1,128)}', space=vmem, size = 0x12000, scoped, tag = 'internal scratch']
  #allocation2 [shape = 'f32[16,32]{1,0:T(8,128)}', space=vmem, size = 0x2000, scoped, tag = 'scratch operand']
  %s0 = inlined_call_operand.vmem [shape: f32[16,32], index: 0, kind: input, shape index: {}]
  %s1 = inlined_call_operand.vmem [shape: f32[32,128], index: 1, kind: input, shape index: {}]
  %s2 = inlined_call_operand.vmem [shape: f32[64,32], index: 2, kind: input, shape index: {}]
  %s3 = inlined_call_operand.hbm [shape: f32[16,32], index: 3, kind: output, shape index: {}]
  %s4 = sld [smem:[#allocation0]]
  $region30: #{tpu_custom_call.1} parent=0
    _
  %s6 = ssub.s32 1, %s4
  %s7 = scalar_select 0, %s6, %s4
  $region1: #{tpu_custom_call.1} parent=0
    #allocation3 [shape = 'u8[8192]{0}', space=vmem, size = 0x2000, scoped, tag = 'output window, operand 0, single buffered']
    #allocation4 [shape = 's32[1]{0}', space=sflag, size = 0x4, scoped, tag = 'scoped memory for tpu_custom_call.1']
    %8 = vsyncpa [#allocation4], 0
    // Predicated region
    $region2: #{tpu_custom_call.1} parent=1 // pred_check
      _
    $region3: #{tpu_custom_call.1} parent=1 // pred_check_branch
      %10 = sbr.rel (0) target = $region5
    $region4: #{tpu_custom_call.1} parent=1 // pred_region
      _
    $region5: #{tpu_custom_call.1} parent=1 // pred_fallthru
      _
    // Predicated region
    $region6: #{tpu_custom_call.1} parent=1 // pred_check
      _
    $region7: #{tpu_custom_call.1} parent=1 // pred_check_branch
      %12 = sbr.rel (0) target = $region9
    $region8: #{tpu_custom_call.1} parent=1 // pred_region
      _
    $region9: #{tpu_custom_call.1} parent=1 // pred_fallthru
      _
    // Predicated region
    $region10: #{tpu_custom_call.1} parent=1 // pred_check
      _
    $region11: #{tpu_custom_call.1} parent=1 // pred_check_branch
      %14 = sbr.rel (0) target = $region13
    $region12: #{tpu_custom_call.1} parent=1 // pred_region
      _
    $region13: #{tpu_custom_call.1} parent=1 // pred_fallthru
      _
    %p15 = scmp.eq.s32.totalorder 0, 0
    // Predicated region
    $region14: #{tpu_custom_call.1} parent=1 // pred_check
      %p16 = pneg %p15
    $region15: #{tpu_custom_call.1} parent=1 // pred_check_branch
      %18 = sbr.rel (%p16) target = $region17
    $region16: #{tpu_custom_call.1} parent=1 // pred_region
      %vm19 = vcmask 261120
      %20 = vst.msk [vmem:[#allocation2] sm:$0xff] %vm19, 0.0
      %21 = vst.msk [vmem:[#allocation2 + $0x8] sm:$0xff] %vm19, 0.0
    $region17: #{tpu_custom_call.1} parent=1 // pred_fallthru
      _
    %v22 = vld [vmem:[%s0] sm:$0xff]
    %v23 = vld [vmem:[%s0 + $0x8] sm:$0xff]
    %v24 = vld [vmem:[%s1] sm:$0xff]
    %v25 = vld [vmem:[%s1 + $0x8] sm:$0xff]
    %v26 = vld [vmem:[%s1 + $0x10] sm:$0xff]
    %v27 = vld [vmem:[%s1 + $0x18] sm:$0xff]
    %vm28 = vcmask 261120
    %v30 = vsel %vm28, %v22, 0
    %v33 = vsel %vm28, %v23, 0
    %35 = vmatprep.subr.mxu0 0.0
    %36 = vmatpush1.msra.mxu0 0.0
    %37 = vmatprep.subr.mxu0 0.0
    %38 = vmatpush1.msra.mxu0 0.0
    %39 = vmatprep.subr.mxu0 0.0
    %40 = vmatpush1.msra.mxu0 0.0
    %41 = vmatprep.subr.mxu0 0.0
    %42 = vmatpush1.msra.mxu0 0.0
    %43 = vmatprep.subr.mxu0 0.0
    %44 = vmatpush1.msra.mxu0 0.0
    %45 = vmatprep.subr.mxu0 0.0
    %46 = vmatpush1.msra.mxu0 0.0
    %47 = vmatprep.subr.mxu0 0.0
    %48 = vmatpush1.msra.mxu0 0.0
    %49 = vmatprep.subr.mxu0 0.0
    %50 = vmatpush1.msra.mxu0 0.0
    %51 = vmatprep.subr.mxu0 0.0
    %52 = vmatpush1.msra.mxu0 0.0
    %53 = vmatprep.subr.mxu0 0.0
    %54 = vmatpush1.msra.mxu0 0.0
    %55 = vmatprep.subr.mxu0 0.0
    %56 = vmatpush1.msra.mxu0 0.0
    %57 = vmatprep.subr.mxu0 0.0
    %58 = vmatpush1.msra.mxu0 0.0
    %59 = vmatprep.subr.mxu0 0.0
    %60 = vmatpush1.msra.mxu0 %v27
    %61 = vmatprep.subr.mxu0 0.0
    %62 = vmatpush1.msra.mxu0 %v26
    %63 = vmatprep.subr.mxu0 0.0
    %64 = vmatpush1.msra.mxu0 %v25
    %65 = vmatprep.subr.mxu0 0.0
    %66 = vmatpush1.msra.mxu0 %v24
    %67 = vmatprep.subr.mxu0 0.0
    %68 = vmatpush2.msra.mxu0 0.0
    %69 = vmatprep.subr.mxu0 0.0
    %70 = vmatpush2.msra.mxu0 0.0
    %71 = vmatprep.subr.mxu0 0.0
    %72 = vmatpush2.msra.mxu0 0.0
    %73 = vmatprep.subr.mxu0 0.0
    %74 = vmatpush2.msra.mxu0 0.0
    %75 = vmatprep.subr.mxu0 0.0
    %76 = vmatpush2.msra.mxu0 0.0
    %77 = vmatprep.subr.mxu0 0.0
    %78 = vmatpush2.msra.mxu0 0.0
    %79 = vmatprep.subr.mxu0 0.0
    %80 = vmatpush2.msra.mxu0 0.0
    %81 = vmatprep.subr.mxu0 0.0
    %82 = vmatpush2.msra.mxu0 0.0
    %83 = vmatprep.subr.mxu0 0.0
    %84 = vmatpush2.msra.mxu0 0.0
    %85 = vmatprep.subr.mxu0 0.0
    %86 = vmatpush2.msra.mxu0 0.0
    %87 = vmatprep.subr.mxu0 0.0
    %88 = vmatpush2.msra.mxu0 0.0
    %89 = vmatprep.subr.mxu0 0.0
    %90 = vmatpush2.msra.mxu0 0.0
    %91 = vmatprep.subr.mxu0 0.0
    %92 = vmatpush2.msra.mxu0 0.0
    %93 = vmatprep.subr.mxu0 0.0
    %94 = vmatpush2.msra.mxu0 0.0
    %95 = vmatprep.subr.mxu0 0.0
    %96 = vmatpush2.msra.mxu0 0.0
    %97 = vmatprep.subr.mxu0 0.0
    %98 = vmatpush2.msra.mxu0 0.0
    %99 = vmatprep.mubr.f32.mxu0 0.0
    %100 = vmatmul.mubr.f32.gmra.mxu0 %v30
    %v101 = vpop.f32.mrf.mxu0
    %v102 = vadd.f32 0.0, %v101
    %v103 = vpop.f32.mrf.mxu0
    %104 = vmatprep.mubr.f32.mxu0 0.0
    %105 = vmatmul.mubr.f32.gmra.mxu0 %v33
    %v106 = vpop.f32.mrf.mxu0
    %v107 = vadd.f32 0.0, %v106
    %v108 = vpop.f32.mrf.mxu0
    %109 = vdwg.mxu0
    %v110 = vxor.u32 %v102, 2147483648
    %v111 = vxor.u32 %v107, 2147483648
    %v112 = vmul.f32 %v110, 1.442695
    %v113 = vpow.pop %v112
    %v114 = vmul.f32 %v111, 1.442695
    %v115 = vpow.pop %v114
    %v116 = vadd.f32 %v113, 1.0
    %v117 = vadd.f32 %v115, 1.0
    %v118 = vrcp.pop %v116
    %v119 = vmul.f32 1.0, %v118
    %v120 = vrcp.pop %v117
    %v121 = vmul.f32 1.0, %v120
    %v122 = vmul.f32 %v102, %v119
    %v123 = vmul.f32 %v107, %v121
    %126 = vrot.lane.b32.xlu0 %v102, 64
    %v127 = vpop.permute.xlu0 %126
    %128 = vrot.lane.b32.xlu0 %v107, 64
    %v129 = vpop.permute.xlu0 %128
    %v132 = vmul.f32 %v122, %v127
    %v133 = vmul.f32 %v123, %v129
    %v134 = vld [vmem:[#allocation2] sm:$0xff]
    %v135 = vld [vmem:[#allocation2 + $0x8] sm:$0xff]
    %v136 = vld [vmem:[%s2] sm:$0xff]
    %v137 = vld [vmem:[%s2 + $0x8] sm:$0xff]
    %v138 = vld [vmem:[%s2 + $0x10] sm:$0xff]
    %v139 = vld [vmem:[%s2 + $0x18] sm:$0xff]
    %v140 = vld [vmem:[%s2 + $0x20] sm:$0xff]
    %v141 = vld [vmem:[%s2 + $0x28] sm:$0xff]
    %v142 = vld [vmem:[%s2 + $0x30] sm:$0xff]
    %v143 = vld [vmem:[%s2 + $0x38] sm:$0xff]
    %vm144 = vcmask 523264
    %v146 = vsel %vm144, %v132, 0
    %v149 = vsel %vm144, %v133, 0
    %151 = vmatprep.subr.mxu0 0.0
    %152 = vmatpush1.msra.mxu0 0.0
    %153 = vmatprep.subr.mxu0 0.0
    %154 = vmatpush1.msra.mxu0 0.0
    %155 = vmatprep.subr.mxu0 0.0
    %156 = vmatpush1.msra.mxu0 0.0
    %157 = vmatprep.subr.mxu0 0.0
    %158 = vmatpush1.msra.mxu0 0.0
    %159 = vmatprep.subr.mxu0 0.0
    %160 = vmatpush1.msra.mxu0 0.0
    %161 = vmatprep.subr.mxu0 0.0
    %162 = vmatpush1.msra.mxu0 0.0
    %163 = vmatprep.subr.mxu0 0.0
    %164 = vmatpush1.msra.mxu0 0.0
    %165 = vmatprep.subr.mxu0 0.0
    %166 = vmatpush1.msra.mxu0 0.0
    %167 = vmatprep.subr.mxu0 0.0
    %168 = vmatpush1.msra.mxu0 %v143
    %169 = vmatprep.subr.mxu0 0.0
    %170 = vmatpush1.msra.mxu0 %v142
    %171 = vmatprep.subr.mxu0 0.0
    %172 = vmatpush1.msra.mxu0 %v141
    %173 = vmatprep.subr.mxu0 0.0
    %174 = vmatpush1.msra.mxu0 %v140
    %175 = vmatprep.subr.mxu0 0.0
    %176 = vmatpush1.msra.mxu0 %v139
    %177 = vmatprep.subr.mxu0 0.0
    %178 = vmatpush1.msra.mxu0 %v138
    %179 = vmatprep.subr.mxu0 0.0
    %180 = vmatpush1.msra.mxu0 %v137
    %181 = vmatprep.subr.mxu0 0.0
    %182 = vmatpush1.msra.mxu0 %v136
    %183 = vmatprep.subr.mxu0 0.0
    %184 = vmatpush2.msra.mxu0 0.0
    %185 = vmatprep.subr.mxu0 0.0
    %186 = vmatpush2.msra.mxu0 0.0
    %187 = vmatprep.subr.mxu0 0.0
    %188 = vmatpush2.msra.mxu0 0.0
    %189 = vmatprep.subr.mxu0 0.0
    %190 = vmatpush2.msra.mxu0 0.0
    %191 = vmatprep.subr.mxu0 0.0
    %192 = vmatpush2.msra.mxu0 0.0
    %193 = vmatprep.subr.mxu0 0.0
    %194 = vmatpush2.msra.mxu0 0.0
    %195 = vmatprep.subr.mxu0 0.0
    %196 = vmatpush2.msra.mxu0 0.0
    %197 = vmatprep.subr.mxu0 0.0
    %198 = vmatpush2.msra.mxu0 0.0
    %199 = vmatprep.subr.mxu0 0.0
    %200 = vmatpush2.msra.mxu0 0.0
    %201 = vmatprep.subr.mxu0 0.0
    %202 = vmatpush2.msra.mxu0 0.0
    %203 = vmatprep.subr.mxu0 0.0
    %204 = vmatpush2.msra.mxu0 0.0
    %205 = vmatprep.subr.mxu0 0.0
    %206 = vmatpush2.msra.mxu0 0.0
    %207 = vmatprep.subr.mxu0 0.0
    %208 = vmatpush2.msra.mxu0 0.0
    %209 = vmatprep.subr.mxu0 0.0
    %210 = vmatpush2.msra.mxu0 0.0
    %211 = vmatprep.subr.mxu0 0.0
    %212 = vmatpush2.msra.mxu0 0.0
    %213 = vmatprep.subr.mxu0 0.0
    %214 = vmatpush2.msra.mxu0 0.0
    %215 = vmatprep.mubr.f32.mxu0 0.0
    %216 = vmatmul.mubr.f32.gmra.mxu0 %v146
    %v217 = vpop.f32.mrf.mxu0
    %v218 = vadd.f32 0.0, %v217
    %v219 = vpop.f32.mrf.mxu0
    %220 = vmatprep.mubr.f32.mxu0 0.0
    %221 = vmatmul.mubr.f32.gmra.mxu0 %v149
    %v222 = vpop.f32.mrf.mxu0
    %v223 = vadd.f32 0.0, %v222
    %v224 = vpop.f32.mrf.mxu0
    %225 = vdwg.mxu0
    %v226 = vadd.f32 %v134, %v218
    %v227 = vadd.f32 %v135, %v223
    %228 = vst.msk [vmem:[#allocation2] sm:$0xff] %vm28, %v226
    %229 = vst.msk [vmem:[#allocation2 + $0x8] sm:$0xff] %vm28, %v227
    // Predicated region
    $region18: #{tpu_custom_call.1} parent=1 // pred_check
      %p230 = pneg %p15
    $region19: #{tpu_custom_call.1} parent=1 // pred_check_branch
      %232 = sbr.rel (%p230) target = $region21
    $region20: #{tpu_custom_call.1} parent=1 // pred_region
      %v233 = vld [vmem:[#allocation2] sm:$0xff]
      %v234 = vld [vmem:[#allocation2 + $0x8] sm:$0xff]
      %235 = vst.msk [vmem:[#allocation3] sm:$0xff] %vm28, %v233
      %236 = vst.msk [vmem:[#allocation3 + $0x8] sm:$0xff] %vm28, %v234
    $region21: #{tpu_custom_call.1} parent=1 // pred_fallthru
      _
    // Predicated region
    $region22: #{tpu_custom_call.1} parent=1 // pred_check
      _
    $region23: #{tpu_custom_call.1} parent=1 // pred_check_branch
      %238 = sbr.rel (0) target = $region25
    $region24: #{tpu_custom_call.1} parent=1 // pred_region
      %s240 = ssub.s32 256, 256
      %241 = vsyncadd [#allocation4], %s240
      %s242 = sshll.u32 [#allocation3], 4
      %s243 = int_to_ptr.vmem [resolvable:$true] %s242
      %248 = dma.vmem_to_hbm [thread:$0]  %s243, 256, %s3, [#allocation4], 128, 128, 8
    $region25: #{tpu_custom_call.1} parent=1 // pred_fallthru
      _
    // Predicated region
    $region26: #{tpu_custom_call.1} parent=1 // pred_check
      _
    $region27: #{tpu_custom_call.1} parent=1 // pred_check_branch
      %250 = sbr.rel (0) target = $region29
    $region28: #{tpu_custom_call.1} parent=1 // pred_region
      %251 = dma.done [#allocation4], 256
    $region29: #{tpu_custom_call.1} parent=1 // pred_fallthru
      _
    %252 = vsyncpa [#allocation4], 1

</llo_original>
